<compile_context>
chip_gen: v5e
topology: v5e:2x2
jax: 0.10.0
libtpu: 0.0.40
codegen_flags: <defaults>
</compile_context>

<pallas_src>
import math

import jax
import jax.numpy as jnp
from jax.experimental import pallas as pl
from jax.experimental.pallas import tpu as pltpu

# ScaleDynamicRange.__init__ defaults (no learnable parameters in this module)
SCALER_BOUNDS = (0.0, 1.0)
RANGE = SCALER_BOUNDS[1] - SCALER_BOUNDS[0]
EPSILON = 1e-9

_VMEM_LIMIT = 32 * 1024 * 1024       # explicit scoped-VMEM budget (safe on v5e/v6e/v7x)
_FUSE_MAX_ELEMS = 512 * 1024         # <= 2 MiB f32 slab -> single fused kernel
_MAX_LANE_UNITS = 512                # lanes <= 512*128 = 65536 -> (8, L) block <= 2 MiB f32
_MIN_LANE_UNITS_TWO_PASS = 64        # below 256 KiB blocks, prefer padding to a nicer shape
_PAD_LANES = 16 * 1024               # pad-path lane width: block (8, 16384) = 512 KiB f32


def _round_up(n, m):
    return ((n + m - 1) // m) * m


def _largest_lane_units(total):
    """Largest m <= _MAX_LANE_UNITS with (8 * 128 * m) dividing `total`.
    Returns None if total is not a multiple of 1024."""
    if total % 1024 != 0:
        return None
    units = total // 1024
    for m in range(min(_MAX_LANE_UNITS, units), 0, -1):
        if units % m == 0:
            return m
    return 1


# ---------------------------------------------------------------------------
# Kernels
# ---------------------------------------------------------------------------
def _fused_kernel(x_ref, o_ref):
    """Whole (padded) slab resident in VMEM: min/max + rescale in one pass."""
    xf = x_ref[...].astype(jnp.float32)
    mn = jnp.min(xf)
    mx = jnp.max(xf)
    scale = RANGE / ((mx - mn) + EPSILON)
    o_ref[...] = ((xf - mn) * scale).astype(o_ref.dtype)


def _minmax_kernel(x_ref, mn_ref, mx_ref, mn_acc, mx_acc):
    """Global min/max: elementwise accumulate into (8, LANES) VMEM scratch,
    cross-lane/sublane reduce to (1,1) only once at the last grid step."""
    j = pl.program_id(0)

    @pl.when(j == 0)
    def _init():
        mn_acc[...] = jnp.full_like(mn_acc, jnp.inf)
        mx_acc[...] = jnp.full_like(mx_acc, -jnp.inf)

    xf = x_ref[...].astype(jnp.float32)
    mn_acc[...] = jnp.minimum(mn_acc[...], xf)
    mx_acc[...] = jnp.maximum(mx_acc[...], xf)

    @pl.when(j == pl.num_programs(0) - 1)
    def _finalize():
        mn_ref[...] = jnp.min(mn_acc[...], axis=(0, 1), keepdims=True)
        mx_ref[...] = jnp.max(mx_acc[...], axis=(0, 1), keepdims=True)


def _scale_kernel(params_ref, x_ref, o_ref):
    """Elementwise (x - min) * scale with (min, scale) read from SMEM."""
    mn = params_ref[0]
    scale = params_ref[1]
    xf = x_ref[...].astype(jnp.float32)
    o_ref[...] = ((xf - mn) * scale).astype(o_ref.dtype)


# ---------------------------------------------------------------------------
# Wrapper
# ---------------------------------------------------------------------------
@jax.jit
def scale_dynamic_range(x):
    """Pallas implementation of ScaleDynamicRange.forward."""
    orig_shape = x.shape
    total = int(math.prod(orig_shape))
    # PyTorch returns float for float inputs; integer inputs promote to f32.
    out_dtype = x.dtype if jnp.issubdtype(x.dtype, jnp.floating) else jnp.float32

    # ---- choose the (rows, lanes) slab and padding (all static Python) ----
    if total <= _FUSE_MAX_ELEMS:
        fused = True
        m = _largest_lane_units(total)
        if m is None:
            padded = _round_up(total, 1024)
            m = _largest_lane_units(padded)
        else:
            padded = total
        lanes = 128 * m                       # -> rows == 8, fully lane-dense
    else:
        fused = False
        m = _largest_lane_units(total)
        if m is None or m < _MIN_LANE_UNITS_TWO_PASS:
            lanes = _PAD_LANES
            padded = _round_up(total, 8 * lanes)
        else:
            lanes = 128 * m
            padded = total
    rows = padded // lanes

    # ---- build the slab in the native dtype (no wrapper astype round-trip) ----
    x_flat = x.reshape(-1)
    if padded != total:
        # pad with an in-range element so the global min/max are unchanged
        fill = jnp.full((padded - total,), x_flat[0], dtype=x.dtype)
        x_flat = jnp.concatenate([x_flat, fill])
    x2 = x_flat.reshape(rows, lanes)

    if fused:
        # -------- single pass: one HBM read, one HBM write --------
        out2 = pl.pallas_call(
            _fused_kernel,
            out_shape=jax.ShapeDtypeStruct((rows, lanes), out_dtype),
            compiler_params=pltpu.CompilerParams(vmem_limit_bytes=_VMEM_LIMIT),
        )(x2)
    else:
        grid = (rows // 8,)

        # -------- pass 1: global min / max --------
        mn, mx = pl.pallas_call(
            _minmax_kernel,
            out_shape=(
                jax.ShapeDtypeStruct((1, 1), jnp.float32),
                jax.ShapeDtypeStruct((1, 1), jnp.float32),
            ),
            grid_spec=pltpu.PrefetchScalarGridSpec(
                num_scalar_prefetch=0,
                grid=grid,
                in_specs=[pl.BlockSpec((8, lanes), lambda j: (j, 0))],
                out_specs=(
                    pl.BlockSpec((1, 1), lambda j: (0, 0)),
                    pl.BlockSpec((1, 1), lambda j: (0, 0)),
                ),
                scratch_shapes=[
                    pltpu.VMEM((8, lanes), jnp.float32),
                    pltpu.VMEM((8, lanes), jnp.float32),
                ],
            ),
            compiler_params=pltpu.CompilerParams(
                dimension_semantics=("arbitrary",),
                vmem_limit_bytes=_VMEM_LIMIT,
            ),
        )(x2)

        # precompute (min, scale) once in XLA; pass to pass 2 as SMEM scalars
        mn_s = mn[0, 0]
        scale_s = RANGE / ((mx[0, 0] - mn_s) + EPSILON)
        params = jnp.stack([mn_s, scale_s]).astype(jnp.float32)

        # -------- pass 2: elementwise rescale --------
        out2 = pl.pallas_call(
            _scale_kernel,
            out_shape=jax.ShapeDtypeStruct((rows, lanes), out_dtype),
            grid_spec=pltpu.PrefetchScalarGridSpec(
                num_scalar_prefetch=0,
                grid=grid,
                in_specs=[
                    pl.BlockSpec(memory_space=pltpu.MemorySpace.SMEM),
                    pl.BlockSpec((8, lanes), lambda j: (j, 0)),
                ],
                out_specs=pl.BlockSpec((8, lanes), lambda j: (j, 0)),
            ),
            compiler_params=pltpu.CompilerParams(
                dimension_semantics=("parallel",),
                vmem_limit_bytes=_VMEM_LIMIT,
            ),
        )(params, x2)

    out_flat = out2.reshape(-1)
    if padded != total:
        out_flat = out_flat[:total]
    return out_flat.reshape(orig_shape)


if __name__ == "__main__":
    key = jax.random.PRNGKey(0)
    # NCHW, small shapes: batch=2, channels=4, spatial=16x16
    x = jax.random.normal(key, (2, 4, 16, 16), dtype=jnp.float32) * 3.0 + 1.5

    out = scale_dynamic_range(x)
    out = jax.block_until_ready(out)

    # Pure-JAX reference of the PyTorch forward.
    x_minsub = x - jnp.min(x)
    ref = x_minsub * (RANGE / (jnp.max(x_minsub) + EPSILON))

    assert out.shape == x.shape and out.dtype == x.dtype
    assert jnp.allclose(out, ref, atol=1e-6, rtol=1e-6), (
        f"max abs err = {jnp.max(jnp.abs(out - ref))}"
    )
    print("KERNEL_OK")
</pallas_src>

<mosaic_0001>
module attributes {stable_mosaic.version = 11 : i64} {
  func.func @_fused_kernel(%arg0: memref<8x256xf32, #tpu.memory_space<vmem>>, %arg1: memref<8x256xf32, #tpu.memory_space<vmem>>) attributes {dimension_semantics = [], scalar_prefetch = 0 : i64, scratch_operands = 0 : i64, tpu.core_type = #tpu.core_type<tc>} {
    %c0 = arith.constant 0 : index
    %c0_0 = arith.constant 0 : index
    %0 = vector.load %arg0[%c0, %c0_0] : memref<8x256xf32, #tpu.memory_space<vmem>>, vector<8x256xf32>
    %1 = vector.shape_cast %0 : vector<8x256xf32> to vector<1x8x256xf32>
    %cst = arith.constant dense<0x7F800000> : vector<1xf32>
    %2 = vector.multi_reduction <minimumf>, %1, %cst [1, 2] : vector<1x8x256xf32> to vector<1xf32>
    %3 = vector.shape_cast %2 : vector<1xf32> to vector<1x1x1xf32>
    %4 = vector.extract %3[0, 0, 0] : f32 from vector<1x1x1xf32>
    %5 = vector.shape_cast %0 : vector<8x256xf32> to vector<1x8x256xf32>
    %cst_1 = arith.constant dense<0xFF800000> : vector<1xf32>
    %6 = vector.multi_reduction <maximumf>, %5, %cst_1 [1, 2] : vector<1x8x256xf32> to vector<1xf32>
    %7 = vector.shape_cast %6 : vector<1xf32> to vector<1x1x1xf32>
    %8 = vector.extract %7[0, 0, 0] : f32 from vector<1x1x1xf32>
    %9 = arith.subf %8, %4 : f32
    %cst_2 = arith.constant 9.99999971E-10 : f32
    %10 = arith.addf %9, %cst_2 : f32
    %cst_3 = arith.constant 1.000000e+00 : f32
    %11 = arith.divf %cst_3, %10 : f32
    %12 = vector.broadcast %4 : f32 to vector<8x256xf32>
    %13 = arith.subf %0, %12 : vector<8x256xf32>
    %14 = vector.broadcast %11 : f32 to vector<8x256xf32>
    %15 = arith.mulf %13, %14 : vector<8x256xf32>
    %c0_4 = arith.constant 0 : index
    %c0_5 = arith.constant 0 : index
    %16 = vector.load %arg1[%c0_4, %c0_5] : memref<8x256xf32, #tpu.memory_space<vmem>>, vector<8x256xf32>
    tpu.vector_store %arg1[%c0_4, %c0_5], %15 {strides = array<i32>} : memref<8x256xf32, #tpu.memory_space<vmem>>, vector<8x256xf32>,
    return
  }
}

</mosaic_0001>

<llo_original>
// kernel: scale_dynamic_range.1
$region0: #{scale_dynamic_range.1}
  #allocation0 [shape = 'u32[]', space=smem, size = 0x4, offset = 0x4, fixed_abs, tag = 'smem constant byte address 0x4 - core index']
  #allocation1 [shape = 'u32[72,128]{1,0:T(1,128)}', space=vmem, size = 0x9000, scoped, tag = 'internal scratch']
  %s0 = inlined_call_operand.vmem [shape: f32[8,256], index: 0, kind: input, shape index: {}]
  %s1 = inlined_call_operand.vmem [shape: f32[8,256], index: 1, kind: output, shape index: {}]
  %s2 = sld [smem:[#allocation0]]
  $region14: #{scale_dynamic_range.1} parent=0
    _
  %s4 = ssub.s32 1, %s2
  %s5 = scalar_select 0, %s4, %s2
  // Predicated region
  $region2: #{scale_dynamic_range.1} parent=0 // pred_check
    _
  $region3: #{scale_dynamic_range.1} parent=0 // pred_check_branch
    %7 = sbr.rel (0) target = $region5
  $region4: #{scale_dynamic_range.1} parent=0 // pred_region
    _
  $region5: #{scale_dynamic_range.1} parent=0 // pred_fallthru
    _
  %v8 = vld [vmem:[%s0] sm:$0xff]
  %v9 = vld [vmem:[%s0 + $0x8] sm:$0xff]
  %v10 = vmin.f32 %v8, %v9
  %11 = vmin.xlane.f32.xlu0 %v10
  %v12 = vpop.xlane.xlu0 %11
  %v13 = vrot.slane %v12, 4
  %v14 = vmin.f32 %v12, %v13
  %v15 = vrot.slane %v14, 2
  %v16 = vmin.f32 %v14, %v15
  %v17 = vrot.slane %v16, 1
  %v18 = vmin.f32 %v16, %v17
  %s19 = vtos %v18
  %v20 = vmax.f32 %v8, %v9
  %21 = vmax.xlane.f32.xlu0 %v20
  %v22 = vpop.xlane.xlu0 %21
  %v23 = vrot.slane %v22, 4
  %v24 = vmax.f32 %v22, %v23
  %v25 = vrot.slane %v24, 2
  %v26 = vmax.f32 %v24, %v25
  %v27 = vrot.slane %v26, 1
  %v28 = vmax.f32 %v26, %v27
  %s29 = vtos %v28
  %s30 = ssub.f32 %s29, %s19
  %s31 = sadd.f32 %s30, 1e-09
  %v32 = vstv %s31
  %v33 = vrcp.pop %v32
  %v34 = vmul.f32 %v32, %v33
  %v35 = vsub.f32 1.0, %v34
  %v36 = vmul.f32 %v33, %v35
  %v37 = vadd.f32 %v33, %v36
  %vm38 = vweird.f32 %v32
  %vm39 = vweird.f32 %v33
  %vm40 = vmor %vm38, %vm39
  %v41 = vsel %vm40, %v33, %v37
  %v42 = vand.u32 2147483647, %v32
  %vm43 = vcmp.eq.f32.partialorder %v42, 8.507059e+37
  %v44 = vand.u32 %v32, 2147483648
  %v45 = vor.u32 1.1754944e-38, %v44
  %v46 = vsel %vm43, %v45, %v41
  %s47 = vtos %v46
  %v48 = vstv %s19
  %v49 = vsub.f32 %v8, %v48
  %v50 = vsub.f32 %v9, %v48
  %v51 = vstv %s47
  %v52 = vmul.f32 %v49, %v51
  %v53 = vmul.f32 %v50, %v51
  %54 = vst [vmem:[%s1] sm:$0xff] %v52
  %55 = vst [vmem:[%s1 + $0x8] sm:$0xff] %v53
  // Predicated region
  $region6: #{scale_dynamic_range.1} parent=0 // pred_check
    _
  $region7: #{scale_dynamic_range.1} parent=0 // pred_check_branch
    %57 = sbr.rel (0) target = $region9
  $region8: #{scale_dynamic_range.1} parent=0 // pred_region
    _
  $region9: #{scale_dynamic_range.1} parent=0 // pred_fallthru
    _
  // Predicated region
  $region10: #{scale_dynamic_range.1} parent=0 // pred_check
    _
  $region11: #{scale_dynamic_range.1} parent=0 // pred_check_branch
    %59 = sbr.rel (0) target = $region13
  $region12: #{scale_dynamic_range.1} parent=0 // pred_region
    _
  $region13: #{scale_dynamic_range.1} parent=0 // pred_fallthru
    _

</llo_original>
